<compile_context>
chip_gen: v7x
topology: tpu7x:2x2x1
jax: 0.10.0
libtpu: 0.0.40
codegen_flags: <defaults>
</compile_context>

<pallas_src>
import functools

import jax
import jax.numpy as jnp
from jax.experimental import pallas as pl
from jax.experimental.pallas import tpu as pltpu

TAU = 0.2      # GumbelSoftmax temperature (synthcity default), hard=False
_LANE = 128    # TPU lane width


def _round_up(x: int, m: int) -> int:
    return ((x + m - 1) // m) * m


def _make_decoder_kernel(n_hidden: int, cat_slices, out_dim: int,
                         out_dim_padded: int):
    """Builds the Pallas kernel.

    Kernel ref order:
      x, (W_0, b_0), ..., (W_{n_hidden}, b_{n_hidden}), gumbel, out, g_scratch
    Weights are bf16 [in, out_padded], biases f32 [1, out_padded],
    gumbel f32 [tile_b, out_dim] (unpadded lanes), g_scratch f32 VMEM.
    """
    n_layers = n_hidden + 1
    inv_tau = 1.0 / TAU

    def kernel(*refs):
        x_ref = refs[0]
        g_ref = refs[1 + 2 * n_layers]
        out_ref = refs[2 + 2 * n_layers]
        gpad_ref = refs[3 + 2 * n_layers]          # VMEM scratch [tile_b, p_out]

        # MLP: Linear -> relu for hidden layers, final Linear produces logits.
        # bf16 operands into the MXU, f32 accumulation; elementwise stays f32
        # (safe on v5e), activations re-enter the MXU as bf16.
        h = x_ref[...]                              # already bf16
        logits = None
        for layer in range(n_layers):
            w_ref = refs[1 + 2 * layer]
            b_ref = refs[2 + 2 * layer]
            acc = jnp.dot(h, w_ref[...],
                          preferred_element_type=jnp.float32) + b_ref[...]
            if layer < n_hidden:
                h = jnp.maximum(acc, 0.0).astype(jnp.bfloat16)   # relu
            else:
                logits = acc                        # [tile_b, out_dim_padded]

        # Widen the unpadded gumbel block to the padded lane width via VMEM
        # scratch (zero the buffer, masked store of the real columns, read back
        # full width).  Re-zeroed every grid step so "parallel" stays safe.
        gpad_ref[...] = jnp.zeros_like(gpad_ref)
        gpad_ref[:, :out_dim] = g_ref[...]
        g_full = gpad_ref[...]                      # [tile_b, out_dim_padded]

        # Multi-activation head, full lane-width with masks; single dense store.
        col = jax.lax.broadcasted_iota(jnp.int32, (1, out_dim_padded), 1)
        z = (logits + g_full) * jnp.float32(inv_tau)
        y = jnp.tanh(logits)                        # tanh cols; padded cols -> 0
        for start, end in cat_slices:               # grouped masked softmax
            mask = (col >= start) & (col < end)
            zg = jnp.where(mask, z, -1e30)
            m = jnp.max(zg, axis=-1, keepdims=True)
            e = jnp.exp(zg - m)                     # exactly 0 outside the group
            s = jnp.sum(e, axis=-1, keepdims=True)
            p = e * pl.reciprocal(s, approx=True)   # EUP reciprocal
            y = jnp.where(mask, p, y)
        out_ref[...] = y.astype(out_ref.dtype)      # one lane-dense store

    return kernel


def decoder_forward(x, padded_params, gumbel, output_config, *,
                    max_tile_b=2048, out_dtype=jnp.float32):
    """Runs the Decoder forward pass with a batch-tiled Pallas call.

    x:             [B, input_dim] float32 (cast to bf16 for the DMA stream)
    padded_params: flat list [W0, b0, ..., W_out, b_out]
                   W_i bf16 [in_padded, out_padded], b_i f32 [1, out_padded]
    gumbel:        [B, sum(output_dims)] float32 gumbel noise (unpadded)
    """
    batch, in_dim = x.shape
    out_dim = sum(d for d, _ in output_config)
    p_out = _round_up(out_dim, _LANE)
    n_hidden = len(padded_params) // 2 - 1

    # Categorical (gumbel_softmax) column ranges — static.
    cat_slices, start = [], 0
    for d, act in output_config:
        if act == "gumbel_softmax":
            cat_slices.append((start, start + d))
        start += d
    cat_slices = tuple(cat_slices)

    # Balanced batch tiling: minimize padding; force >= 2 grid steps when the
    # batch is big enough so both v7x TensorCores get work.
    n_tiles = max(1, -(-batch // max_tile_b))
    if n_tiles == 1 and batch >= 512:
        n_tiles = 2
    tile_b = _round_up(-(-batch // n_tiles), 16)    # 16: bf16 sublane packing
    b_pad = _round_up(batch, tile_b)

    x = x.astype(jnp.bfloat16)                      # halve the x HBM stream
    if b_pad != batch:
        x = jnp.pad(x, ((0, b_pad - batch), (0, 0)))
        gumbel = jnp.pad(gumbel, ((0, b_pad - batch), (0, 0)))

    in_specs = [pl.BlockSpec((tile_b, in_dim), lambda i: (i, 0))]
    for p in padded_params:                          # weights/biases resident
        in_specs.append(pl.BlockSpec(p.shape, lambda i: (0, 0)))
    in_specs.append(pl.BlockSpec((tile_b, out_dim), lambda i: (i, 0)))  # gumbel
    out_specs = pl.BlockSpec((tile_b, p_out), lambda i: (i, 0))

    # VMEM budget from the real footprint (lane-padded VMEM layouts),
    # + 2 MiB headroom; well below v7x's 64 MiB physical VMEM.
    out_isize = jnp.dtype(out_dtype).itemsize
    weight_bytes = 2 * sum(int(p.size) * p.dtype.itemsize for p in padded_params)
    stream_bytes = 2 * tile_b * (_round_up(in_dim, _LANE) * 2     # x (bf16)
                                 + _round_up(out_dim, _LANE) * 4  # gumbel (f32)
                                 + p_out * out_isize)             # output
    max_w = max(int(p.shape[1]) for p in padded_params[::2])
    scratch_bytes = tile_b * p_out * 4
    act_bytes = 6 * tile_b * max_w * 4
    vmem_limit = int(min(max(weight_bytes + stream_bytes + scratch_bytes
                             + act_bytes + (2 << 20), 4 << 20), 48 << 20))

    kernel = _make_decoder_kernel(n_hidden, cat_slices, out_dim, p_out)
    out = pl.pallas_call(
        kernel,
        out_shape=jax.ShapeDtypeStruct((b_pad, p_out), out_dtype),
        grid=(b_pad // tile_b,),
        in_specs=in_specs,
        out_specs=out_specs,
        scratch_shapes=[pltpu.VMEM((tile_b, p_out), jnp.float32)],
        compiler_params=pltpu.CompilerParams(
            dimension_semantics=("parallel",),
            vmem_limit_bytes=vmem_limit),
    )(x, *padded_params, gumbel)
    return out[:batch, :out_dim]


def init_decoder_params(key, input_dim, hidden_dims, out_dim):
    """Deterministic PyTorch-nn.Linear-style init: U(-1/sqrt(fan_in), +)."""
    dims = [input_dim] + list(hidden_dims) + [out_dim]
    params = []
    for fan_in, fan_out in zip(dims[:-1], dims[1:]):
        key, kw, kb = jax.random.split(key, 3)
        bound = 1.0 / (fan_in ** 0.5)
        w = jax.random.uniform(kw, (fan_in, fan_out), jnp.float32, -bound, bound)
        b = jax.random.uniform(kb, (fan_out,), jnp.float32, -bound, bound)
        params += [w, b]
    return params


def pad_decoder_params(params):
    """Zero-pads every layer's output width to a multiple of 128.

    Weights -> bf16 [in_padded, out_padded], biases -> f32 [1, out_padded].
    Zero-padded rows/columns keep the math exact (padded activations are 0).
    """
    padded = []
    prev_pad = params[0].shape[0]            # input feature dim is kept as-is
    for i in range(len(params) // 2):
        w, b = params[2 * i], params[2 * i + 1]
        in_d, out_d = w.shape
        out_p = _round_up(out_d, _LANE)
        w_p = jnp.zeros((prev_pad, out_p), jnp.float32).at[:in_d, :out_d].set(w)
        b_p = jnp.zeros((1, out_p), jnp.float32).at[0, :out_d].set(b)
        padded += [w_p.astype(jnp.bfloat16), b_p]
        prev_pad = out_p
    return padded


def decoder_reference(x, padded_params, gumbel, output_config):
    """Pure-JAX reference mirroring the kernel's bf16 operand casts."""
    out_dim = sum(d for d, _ in output_config)
    n_layers = len(padded_params) // 2
    h = x
    for i in range(n_layers):
        w = padded_params[2 * i].astype(jnp.float32)
        b = padded_params[2 * i + 1]
        acc = jnp.dot(h.astype(jnp.bfloat16).astype(jnp.float32), w) + b
        h = jnp.maximum(acc, 0.0) if i < n_layers - 1 else acc
    logits = h[:, :out_dim]
    outs, step = [], 0
    for d, act in output_config:
        sl = logits[:, step:step + d]
        if act == "gumbel_softmax":
            outs.append(jax.nn.softmax((sl + gumbel[:, step:step + d]) / TAU,
                                       axis=-1))
        else:
            outs.append(jnp.tanh(sl))
        step += d
    return jnp.concatenate(outs, axis=-1)


if __name__ == "__main__":
    # Small shapes consistent with the module's forward: X is [batch, input_dim].
    batch = 8
    input_dim = 32
    hidden_layers = [64, 32]            # decoder_config['hidden_layers']
    output_dims = [3, 1, 4, 1]          # dims > 1 -> gumbel_softmax, == 1 -> tanh
    output_config = [(d, "gumbel_softmax" if d > 1 else "tanh") for d in output_dims]
    out_dim = sum(output_dims)

    root = jax.random.PRNGKey(0)
    k_x, k_p, k_g = jax.random.split(root, 3)

    x = jax.random.normal(k_x, (batch, input_dim), jnp.float32)
    raw_params = init_decoder_params(k_p, input_dim, hidden_layers, out_dim)
    padded_params = pad_decoder_params(raw_params)
    # Deterministic gumbel noise (glue), unpadded [B, out_dim] — the softmax
    # itself runs in-kernel.
    gumbel = jax.random.gumbel(k_g, (batch, out_dim), jnp.float32)

    fwd = jax.jit(functools.partial(decoder_forward, output_config=output_config))
    out = fwd(x, padded_params, gumbel)
    jax.block_until_ready(out)

    assert out.shape == (batch, out_dim)
    assert bool(jnp.all(jnp.isfinite(out)))

    # Compare against the pure-JAX reference (same bf16 weights, exact softmax).
    ref = decoder_reference(x, padded_params, gumbel, output_config)
    assert bool(jnp.allclose(out, ref, atol=2e-2)), float(jnp.max(jnp.abs(out - ref)))

    # Categorical heads should be valid probability slices; tanh in [-1, 1].
    step = 0
    for d, act in output_config:
        sl = out[:, step:step + d]
        if act == "gumbel_softmax":
            assert bool(jnp.allclose(jnp.sum(sl, axis=-1), 1.0, atol=1e-2))
            assert bool(jnp.all(sl >= 0.0))
        else:
            assert bool(jnp.all(jnp.abs(sl) <= 1.0))
        step += d

    print("KERNEL_OK")
</pallas_src>

<mosaic_0001>
module attributes {stable_mosaic.version = 11 : i64} {
  func.func @kernel(%arg0: i32, %arg1: memref<16x32xbf16, #tpu.memory_space<vmem>>, %arg2: memref<32x128xbf16, #tpu.memory_space<vmem>>, %arg3: memref<1x128xf32, #tpu.memory_space<vmem>>, %arg4: memref<128x128xbf16, #tpu.memory_space<vmem>>, %arg5: memref<1x128xf32, #tpu.memory_space<vmem>>, %arg6: memref<128x128xbf16, #tpu.memory_space<vmem>>, %arg7: memref<1x128xf32, #tpu.memory_space<vmem>>, %arg8: memref<16x9xf32, #tpu.memory_space<vmem>>, %arg9: memref<16x128xf32, #tpu.memory_space<vmem>>, %arg10: memref<16x128xf32, #tpu.memory_space<vmem>>) attributes {dimension_semantics = [#tpu.dimension_semantics<parallel>], iteration_bounds = array<i64: 1>, scalar_prefetch = 0 : i64, scratch_operands = 1 : i64, tpu.core_type = #tpu.core_type<tc>, window_params = [{transform_indices = @transform_0, window_bounds = array<i64: 16, 32>}, {pipeline_mode = #tpu.pipeline_mode<synchronous>, transform_indices = @transform_1, window_bounds = array<i64: 32, 128>}, {pipeline_mode = #tpu.pipeline_mode<synchronous>, transform_indices = @transform_2, window_bounds = array<i64: 1, 128>}, {pipeline_mode = #tpu.pipeline_mode<synchronous>, transform_indices = @transform_3, window_bounds = array<i64: 128, 128>}, {pipeline_mode = #tpu.pipeline_mode<synchronous>, transform_indices = @transform_4, window_bounds = array<i64: 1, 128>}, {pipeline_mode = #tpu.pipeline_mode<synchronous>, transform_indices = @transform_5, window_bounds = array<i64: 128, 128>}, {pipeline_mode = #tpu.pipeline_mode<synchronous>, transform_indices = @transform_6, window_bounds = array<i64: 1, 128>}, {transform_indices = @transform_7, window_bounds = array<i64: 16, 9>}, {transform_indices = @transform_8, window_bounds = array<i64: 16, 128>}]} {
    %c0 = arith.constant 0 : index
    %c0_0 = arith.constant 0 : index
    %0 = vector.load %arg1[%c0, %c0_0] : memref<16x32xbf16, #tpu.memory_space<vmem>>, vector<16x32xbf16>
    %c0_1 = arith.constant 0 : index
    %c0_2 = arith.constant 0 : index
    %1 = vector.load %arg2[%c0_1, %c0_2] : memref<32x128xbf16, #tpu.memory_space<vmem>>, vector<32x128xbf16>
    %cst = arith.constant dense<0.000000e+00> : vector<16x128xf32>
    %2 = tpu.matmul %0, %1, %cst {dimension_numbers = #tpu.dot_dimension_numbers<[1], [0], [0], [1], [0, 0, 1, 1], [], []>} : vector<16x32xbf16>, vector<32x128xbf16>, vector<16x128xf32> -> vector<16x128xf32>
    %c0_3 = arith.constant 0 : index
    %c0_4 = arith.constant 0 : index
    %3 = vector.load %arg3[%c0_3, %c0_4] : memref<1x128xf32, #tpu.memory_space<vmem>>, vector<1x128xf32>
    %4 = vector.broadcast %3 : vector<1x128xf32> to vector<16x128xf32>
    %5 = arith.addf %2, %4 : vector<16x128xf32>
    %cst_5 = arith.constant 0.000000e+00 : f32
    %6 = vector.broadcast %cst_5 : f32 to vector<16x128xf32>
    %7 = arith.maximumf %5, %6 : vector<16x128xf32>
    %8 = arith.truncf %7 : vector<16x128xf32> to vector<16x128xbf16>
    %c0_6 = arith.constant 0 : index
    %c0_7 = arith.constant 0 : index
    %9 = vector.load %arg4[%c0_6, %c0_7] : memref<128x128xbf16, #tpu.memory_space<vmem>>, vector<128x128xbf16>
    %cst_8 = arith.constant dense<0.000000e+00> : vector<16x128xf32>
    %10 = tpu.matmul %8, %9, %cst_8 {dimension_numbers = #tpu.dot_dimension_numbers<[1], [0], [0], [1], [0, 0, 1, 1], [], []>} : vector<16x128xbf16>, vector<128x128xbf16>, vector<16x128xf32> -> vector<16x128xf32>
    %c0_9 = arith.constant 0 : index
    %c0_10 = arith.constant 0 : index
    %11 = vector.load %arg5[%c0_9, %c0_10] : memref<1x128xf32, #tpu.memory_space<vmem>>, vector<1x128xf32>
    %12 = vector.broadcast %11 : vector<1x128xf32> to vector<16x128xf32>
    %13 = arith.addf %10, %12 : vector<16x128xf32>
    %cst_11 = arith.constant 0.000000e+00 : f32
    %14 = vector.broadcast %cst_11 : f32 to vector<16x128xf32>
    %15 = arith.maximumf %13, %14 : vector<16x128xf32>
    %16 = arith.truncf %15 : vector<16x128xf32> to vector<16x128xbf16>
    %c0_12 = arith.constant 0 : index
    %c0_13 = arith.constant 0 : index
    %17 = vector.load %arg6[%c0_12, %c0_13] : memref<128x128xbf16, #tpu.memory_space<vmem>>, vector<128x128xbf16>
    %cst_14 = arith.constant dense<0.000000e+00> : vector<16x128xf32>
    %18 = tpu.matmul %16, %17, %cst_14 {dimension_numbers = #tpu.dot_dimension_numbers<[1], [0], [0], [1], [0, 0, 1, 1], [], []>} : vector<16x128xbf16>, vector<128x128xbf16>, vector<16x128xf32> -> vector<16x128xf32>
    %c0_15 = arith.constant 0 : index
    %c0_16 = arith.constant 0 : index
    %19 = vector.load %arg7[%c0_15, %c0_16] : memref<1x128xf32, #tpu.memory_space<vmem>>, vector<1x128xf32>
    %20 = vector.broadcast %19 : vector<1x128xf32> to vector<16x128xf32>
    %21 = arith.addf %18, %20 : vector<16x128xf32>
    %cst_17 = arith.constant 0.000000e+00 : f32
    %22 = vector.broadcast %cst_17 : f32 to vector<16x128xf32>
    %c0_18 = arith.constant 0 : index
    %c0_19 = arith.constant 0 : index
    %23 = vector.load %arg10[%c0_18, %c0_19] : memref<16x128xf32, #tpu.memory_space<vmem>>, vector<16x128xf32>
    tpu.vector_store %arg10[%c0_18, %c0_19], %22 {strides = array<i32>} : memref<16x128xf32, #tpu.memory_space<vmem>>, vector<16x128xf32>,
    %c0_20 = arith.constant 0 : index
    %c0_21 = arith.constant 0 : index
    %24 = vector.load %arg8[%c0_20, %c0_21] : memref<16x9xf32, #tpu.memory_space<vmem>>, vector<16x9xf32>
    %c0_22 = arith.constant 0 : index
    %c0_23 = arith.constant 0 : index
    %25 = vector.load %arg10[%c0_22, %c0_23] : memref<16x128xf32, #tpu.memory_space<vmem>>, vector<16x9xf32>
    tpu.vector_store %arg10[%c0_22, %c0_23], %24 {strides = array<i32>} : memref<16x128xf32, #tpu.memory_space<vmem>>, vector<16x9xf32>,
    %c0_24 = arith.constant 0 : index
    %c0_25 = arith.constant 0 : index
    %26 = vector.load %arg10[%c0_24, %c0_25] : memref<16x128xf32, #tpu.memory_space<vmem>>, vector<16x128xf32>
    %27 = tpu.iota {dimensions = array<i32: 1>} : vector<1x128xi32>
    %28 = arith.addf %21, %26 : vector<16x128xf32>
    %cst_26 = arith.constant 5.000000e+00 : f32
    %29 = vector.broadcast %cst_26 : f32 to vector<16x128xf32>
    %30 = arith.mulf %28, %29 : vector<16x128xf32>
    %31 = math.tanh %21 : vector<16x128xf32>
    %c0_i32 = arith.constant 0 : i32
    %32 = vector.broadcast %c0_i32 : i32 to vector<1x128xi32>
    %33 = arith.cmpi sge, %27, %32 : vector<1x128xi32>
    %c3_i32 = arith.constant 3 : i32
    %34 = vector.broadcast %c3_i32 : i32 to vector<1x128xi32>
    %35 = arith.cmpi slt, %27, %34 : vector<1x128xi32>
    %36 = arith.andi %33, %35 : vector<1x128xi1>
    %cst_27 = arith.constant -1.000000e+30 : f32
    %37 = vector.shape_cast %36 : vector<1x128xi1> to vector<1x128xi1>
    %38 = vector.broadcast %37 : vector<1x128xi1> to vector<16x128xi1>
    %39 = vector.broadcast %cst_27 : f32 to vector<16x128xf32>
    %40 = arith.select %38, %30, %39 : vector<16x128xi1>, vector<16x128xf32>
    %cst_28 = arith.constant dense<0xFF800000> : vector<16xf32>
    %41 = vector.multi_reduction <maximumf>, %40, %cst_28 [1] : vector<16x128xf32> to vector<16xf32>
    %42 = vector.shape_cast %41 : vector<16xf32> to vector<16x1xf32>
    %43 = vector.broadcast %42 : vector<16x1xf32> to vector<16x128xf32>
    %44 = arith.subf %40, %43 : vector<16x128xf32>
    %45 = math.exp %44 : vector<16x128xf32>
    %cst_29 = arith.constant dense<0.000000e+00> : vector<16xf32>
    %46 = vector.multi_reduction <add>, %45, %cst_29 [1] : vector<16x128xf32> to vector<16xf32>
    %47 = vector.shape_cast %46 : vector<16xf32> to vector<16x1xf32>
    %48 = tpu.reciprocal %47 {approx = true} : vector<16x1xf32> -> vector<16x1xf32>
    %49 = vector.broadcast %48 : vector<16x1xf32> to vector<16x128xf32>
    %50 = arith.mulf %45, %49 : vector<16x128xf32>
    %51 = vector.shape_cast %36 : vector<1x128xi1> to vector<1x128xi1>
    %52 = vector.broadcast %51 : vector<1x128xi1> to vector<16x128xi1>
    %53 = arith.select %52, %50, %31 : vector<16x128xi1>, vector<16x128xf32>
    %c4_i32 = arith.constant 4 : i32
    %54 = vector.broadcast %c4_i32 : i32 to vector<1x128xi32>
    %55 = arith.cmpi sge, %27, %54 : vector<1x128xi32>
    %c8_i32 = arith.constant 8 : i32
    %56 = vector.broadcast %c8_i32 : i32 to vector<1x128xi32>
    %57 = arith.cmpi slt, %27, %56 : vector<1x128xi32>
    %58 = arith.andi %55, %57 : vector<1x128xi1>
    %cst_30 = arith.constant -1.000000e+30 : f32
    %59 = vector.shape_cast %58 : vector<1x128xi1> to vector<1x128xi1>
    %60 = vector.broadcast %59 : vector<1x128xi1> to vector<16x128xi1>
    %61 = vector.broadcast %cst_30 : f32 to vector<16x128xf32>
    %62 = arith.select %60, %30, %61 : vector<16x128xi1>, vector<16x128xf32>
    %cst_31 = arith.constant dense<0xFF800000> : vector<16xf32>
    %63 = vector.multi_reduction <maximumf>, %62, %cst_31 [1] : vector<16x128xf32> to vector<16xf32>
    %64 = vector.shape_cast %63 : vector<16xf32> to vector<16x1xf32>
    %65 = vector.broadcast %64 : vector<16x1xf32> to vector<16x128xf32>
    %66 = arith.subf %62, %65 : vector<16x128xf32>
    %67 = math.exp %66 : vector<16x128xf32>
    %cst_32 = arith.constant dense<0.000000e+00> : vector<16xf32>
    %68 = vector.multi_reduction <add>, %67, %cst_32 [1] : vector<16x128xf32> to vector<16xf32>
    %69 = vector.shape_cast %68 : vector<16xf32> to vector<16x1xf32>
    %70 = tpu.reciprocal %69 {approx = true} : vector<16x1xf32> -> vector<16x1xf32>
    %71 = vector.broadcast %70 : vector<16x1xf32> to vector<16x128xf32>
    %72 = arith.mulf %67, %71 : vector<16x128xf32>
    %73 = vector.shape_cast %58 : vector<1x128xi1> to vector<1x128xi1>
    %74 = vector.broadcast %73 : vector<1x128xi1> to vector<16x128xi1>
    %75 = arith.select %74, %72, %53 : vector<16x128xi1>, vector<16x128xf32>
    %c0_33 = arith.constant 0 : index
    %c0_34 = arith.constant 0 : index
    %76 = vector.load %arg9[%c0_33, %c0_34] : memref<16x128xf32, #tpu.memory_space<vmem>>, vector<16x128xf32>
    tpu.vector_store %arg9[%c0_33, %c0_34], %75 {strides = array<i32>} : memref<16x128xf32, #tpu.memory_space<vmem>>, vector<16x128xf32>,
    return
  }
  func.func @transform_0(%arg0: i32) -> (i32, i32) {
    %c0_i32 = arith.constant 0 : i32
    %c0_i32_0 = arith.constant 0 : i32
    return %arg0, %c0_i32 : i32, i32
  }
  func.func @transform_1(%arg0: i32) -> (i32, i32) {
    %c0_i32 = arith.constant 0 : i32
    %c0_i32_0 = arith.constant 0 : i32
    %c0_i32_1 = arith.constant 0 : i32
    return %c0_i32, %c0_i32_0 : i32, i32
  }
  func.func @transform_2(%arg0: i32) -> (i32, i32) {
    %c0_i32 = arith.constant 0 : i32
    %c0_i32_0 = arith.constant 0 : i32
    %c0_i32_1 = arith.constant 0 : i32
    return %c0_i32, %c0_i32_0 : i32, i32
  }
  func.func @transform_3(%arg0: i32) -> (i32, i32) {
    %c0_i32 = arith.constant 0 : i32
    %c0_i32_0 = arith.constant 0 : i32
    %c0_i32_1 = arith.constant 0 : i32
    return %c0_i32, %c0_i32_0 : i32, i32
  }
  func.func @transform_4(%arg0: i32) -> (i32, i32) {
    %c0_i32 = arith.constant 0 : i32
    %c0_i32_0 = arith.constant 0 : i32
    %c0_i32_1 = arith.constant 0 : i32
    return %c0_i32, %c0_i32_0 : i32, i32
  }
  func.func @transform_5(%arg0: i32) -> (i32, i32) {
    %c0_i32 = arith.constant 0 : i32
    %c0_i32_0 = arith.constant 0 : i32
    %c0_i32_1 = arith.constant 0 : i32
    return %c0_i32, %c0_i32_0 : i32, i32
  }
  func.func @transform_6(%arg0: i32) -> (i32, i32) {
    %c0_i32 = arith.constant 0 : i32
    %c0_i32_0 = arith.constant 0 : i32
    %c0_i32_1 = arith.constant 0 : i32
    return %c0_i32, %c0_i32_0 : i32, i32
  }
  func.func @transform_7(%arg0: i32) -> (i32, i32) {
    %c0_i32 = arith.constant 0 : i32
    %c0_i32_0 = arith.constant 0 : i32
    return %arg0, %c0_i32 : i32, i32
  }
  func.func @transform_8(%arg0: i32) -> (i32, i32) {
    %c0_i32 = arith.constant 0 : i32
    %c0_i32_0 = arith.constant 0 : i32
    return %arg0, %c0_i32 : i32, i32
  }
}

</mosaic_0001>

<llo_original>
// kernel: decoder_forward.1
$region0: #{decoder_forward.1}
  #allocation0 [shape = 'u32[]', space=smem, size = 0x4, offset = 0x4, fixed_abs, tag = 'smem constant byte address 0x4 - core index']
  #allocation1 [shape = 'u32[144,128]{1,0:T(1,128)}', space=vmem, size = 0x12000, scoped, tag = 'internal scratch']
  #allocation2 [shape = 'f32[16,128]{1,0:T(8,128)}', space=vmem, size = 0x2000, scoped, tag = 'scratch operand']
  %s0 = inlined_call_operand.vmem [shape: bf16[16,32], index: 0, kind: input, shape index: {}]
  %s1 = inlined_call_operand.hbm [shape: bf16[32,128], index: 1, kind: input, shape index: {}]
  %s2 = inlined_call_operand.hbm [shape: f32[1,128], index: 2, kind: input, shape index: {}]
  %s3 = inlined_call_operand.hbm [shape: bf16[128,128], index: 3, kind: input, shape index: {}]
  %s4 = inlined_call_operand.hbm [shape: f32[1,128], index: 4, kind: input, shape index: {}]
  %s5 = inlined_call_operand.vmem [shape: bf16[128,128], index: 5, kind: input, shape index: {}]
  %s6 = inlined_call_operand.hbm [shape: f32[1,128], index: 6, kind: input, shape index: {}]
  %s7 = inlined_call_operand.vmem [shape: f32[16,9], index: 7, kind: input, shape index: {}]
  %s8 = inlined_call_operand.vmem [shape: f32[16,128], index: 8, kind: output, shape index: {}]
  %s9 = sld [smem:[#allocation0]]
  $region62: #{decoder_forward.1} parent=0
    _
  %s11 = ssub.s32 1, %s9
  %s12 = scalar_select 0, %s11, %s9
  $region1: #{decoder_forward.1} parent=0
    #allocation3 [shape = 'u8[8192]{0}', space=vmem, size = 0x2000, scoped, tag = 'input window, operand 1, single buffered']
    #allocation4 [shape = 's32[1]{0}', space=sflag, size = 0x4, scoped, tag = 'scoped memory for decoder_forward.1']
    #allocation5 [shape = 'u8[512]{0}', space=vmem, size = 0x400, scoped, tag = 'input window, operand 2, single buffered']
    #allocation6 [shape = 's32[1]{0}', space=sflag, size = 0x4, scoped, tag = 'scoped memory for decoder_forward.1']
    #allocation7 [shape = 'u8[32768]{0}', space=vmem, size = 0x8000, scoped, tag = 'input window, operand 3, single buffered']
    #allocation8 [shape = 'u8[512]{0}', space=vmem, size = 0x400, scoped, tag = 'input window, operand 4, single buffered']
    #allocation9 [shape = 's32[1]{0}', space=sflag, size = 0x4, scoped, tag = 'scoped memory for decoder_forward.1']
    #allocation10 [shape = 'u8[512]{0}', space=vmem, size = 0x400, scoped, tag = 'input window, operand 6, single buffered']
    %13 = vsyncpa [#allocation4], 0
    %14 = vsyncpa [#allocation6], 0
    %15 = vsyncpa [#allocation9], 0
    // Predicated region
    $region2: #{decoder_forward.1} parent=1 // pred_check
      _
    $region3: #{decoder_forward.1} parent=1 // pred_check_branch
      %17 = sbr.rel (0) target = $region5
    $region4: #{decoder_forward.1} parent=1 // pred_region
      _
    $region5: #{decoder_forward.1} parent=1 // pred_fallthru
      _
    // Predicated region
    $region6: #{decoder_forward.1} parent=1 // pred_check
      _
    $region7: #{decoder_forward.1} parent=1 // pred_check_branch
      %19 = sbr.rel (0) target = $region9
    $region8: #{decoder_forward.1} parent=1 // pred_region
      %s21 = ssub.s32 256, 256
      %22 = vsyncadd [#allocation4], %s21
      %s23 = sshll.u32 [#allocation3], 4
      %s24 = int_to_ptr.vmem [resolvable:$true] %s23
      %29 = dma.hbm_to_vmem [thread:$0]  %s1, 256, %s24, [#allocation4], 64, 64, 4
    $region9: #{decoder_forward.1} parent=1 // pred_fallthru
      _
    // Predicated region
    $region10: #{decoder_forward.1} parent=1 // pred_check
      _
    $region11: #{decoder_forward.1} parent=1 // pred_check_branch
      %31 = sbr.rel (0) target = $region13
    $region12: #{decoder_forward.1} parent=1 // pred_region
      %s33 = ssub.s32 16, 16
      %34 = vsyncadd [#allocation6], %s33
      %s36 = sshll.u32 [#allocation5], 4
      %s37 = int_to_ptr.vmem [resolvable:$true] %s36
      %39 = dma.hbm_to_vmem [thread:$0]  %s2, 16, %s37, [#allocation6]
    $region13: #{decoder_forward.1} parent=1 // pred_fallthru
      _
    // Predicated region
    $region14: #{decoder_forward.1} parent=1 // pred_check
      _
    $region15: #{decoder_forward.1} parent=1 // pred_check_branch
      %41 = sbr.rel (0) target = $region17
    $region16: #{decoder_forward.1} parent=1 // pred_region
      %s43 = ssub.s32 1024, 1024
      %44 = vsyncadd [#allocation6], %s43
      %s45 = sshll.u32 [#allocation7], 4
      %s46 = int_to_ptr.vmem [resolvable:$true] %s45
      %51 = dma.hbm_to_vmem [thread:$0]  %s3, 1024, %s46, [#allocation6], 64, 64, 4
    $region17: #{decoder_forward.1} parent=1 // pred_fallthru
      _
    // Predicated region
    $region18: #{decoder_forward.1} parent=1 // pred_check
      _
    $region19: #{decoder_forward.1} parent=1 // pred_check_branch
      %53 = sbr.rel (0) target = $region21
    $region20: #{decoder_forward.1} parent=1 // pred_region
      %s55 = ssub.s32 16, 16
      %56 = vsyncadd [#allocation9], %s55
      %s58 = sshll.u32 [#allocation8], 4
      %s59 = int_to_ptr.vmem [resolvable:$true] %s58
      %61 = dma.hbm_to_vmem [thread:$0]  %s4, 16, %s59, [#allocation9]
    $region21: #{decoder_forward.1} parent=1 // pred_fallthru
      _
    // Predicated region
    $region22: #{decoder_forward.1} parent=1 // pred_check
      _
    $region23: #{decoder_forward.1} parent=1 // pred_check_branch
      %63 = sbr.rel (0) target = $region25
    $region24: #{decoder_forward.1} parent=1 // pred_region
      _
    $region25: #{decoder_forward.1} parent=1 // pred_fallthru
      _
    // Predicated region
    $region26: #{decoder_forward.1} parent=1 // pred_check
      _
    $region27: #{decoder_forward.1} parent=1 // pred_check_branch
      %65 = sbr.rel (0) target = $region29
    $region28: #{decoder_forward.1} parent=1 // pred_region
      %s67 = ssub.s32 16, 16
      %68 = vsyncadd [#allocation9], %s67
      %s70 = sshll.u32 [#allocation10], 4
      %s71 = int_to_ptr.vmem [resolvable:$true] %s70
      %73 = dma.hbm_to_vmem [thread:$0]  %s6, 16, %s71, [#allocation9]
    $region29: #{decoder_forward.1} parent=1 // pred_fallthru
      _
    // Predicated region
    $region30: #{decoder_forward.1} parent=1 // pred_check
      _
    $region31: #{decoder_forward.1} parent=1 // pred_check_branch
      %75 = sbr.rel (0) target = $region33
    $region32: #{decoder_forward.1} parent=1 // pred_region
      _
    $region33: #{decoder_forward.1} parent=1 // pred_fallthru
      _
    // Predicated region
    $region34: #{decoder_forward.1} parent=1 // pred_check
      _
    $region35: #{decoder_forward.1} parent=1 // pred_check_branch
      %77 = sbr.rel (0) target = $region37
    $region36: #{decoder_forward.1} parent=1 // pred_region
      %78 = dma.done [#allocation4], 256
    $region37: #{decoder_forward.1} parent=1 // pred_fallthru
      _
    // Predicated region
    $region38: #{decoder_forward.1} parent=1 // pred_check
      _
    $region39: #{decoder_forward.1} parent=1 // pred_check_branch
      %80 = sbr.rel (0) target = $region41
    $region40: #{decoder_forward.1} parent=1 // pred_region
      %81 = dma.done [#allocation6], 16
    $region41: #{decoder_forward.1} parent=1 // pred_fallthru
      _
    // Predicated region
    $region42: #{decoder_forward.1} parent=1 // pred_check
      _
    $region43: #{decoder_forward.1} parent=1 // pred_check_branch
      %83 = sbr.rel (0) target = $region45
    $region44: #{decoder_forward.1} parent=1 // pred_region
      %84 = dma.done [#allocation6], 1024
    $region45: #{decoder_forward.1} parent=1 // pred_fallthru
      _
    // Predicated region
    $region46: #{decoder_forward.1} parent=1 // pred_check
      _
    $region47: #{decoder_forward.1} parent=1 // pred_check_branch
      %86 = sbr.rel (0) target = $region49
    $region48: #{decoder_forward.1} parent=1 // pred_region
      %87 = dma.done [#allocation9], 16
    $region49: #{decoder_forward.1} parent=1 // pred_fallthru
      _
    // Predicated region
    $region50: #{decoder_forward.1} parent=1 // pred_check
      _
    $region51: #{decoder_forward.1} parent=1 // pred_check_branch
      %89 = sbr.rel (0) target = $region53
    $region52: #{decoder_forward.1} parent=1 // pred_region
      %90 = dma.done [#allocation9], 16
    $region53: #{decoder_forward.1} parent=1 // pred_fallthru
      _
    %v92 = vld [vmem:[%s0] sm:$0xf]
    %v93 = vld [vmem:[%s0 + $0x4] sm:$0xf]
    %v94 = vld [vmem:[#allocation3] sm:$0xf]
    %v95 = vld [vmem:[#allocation3 + $0x4] sm:$0xf]
    %v96 = vld [vmem:[#allocation3 + $0x8] sm:$0xf]
    %v97 = vld [vmem:[#allocation3 + $0xc] sm:$0xf]
    %v98 = vld [vmem:[#allocation5] sm:$0x1]
    %v100 = vlaneseq
    %v101 = vshrl.u32 %v100, 7
    %v102 = vsub.s32 0, %v101
    %v103 = vrot.slane %v98, %v102
    %v107 = vunpack.c.l.b16 %v92
    %v108 = vunpack.c.l.b16 %v93
    %v109 = vpack.c.b16 %v108, %v107
    %v114 = vunpack.c.l.b16 %v94
    %v115 = vunpack.c.l.b16 %v95
    %v116 = vunpack.c.l.b16 %v96
    %v117 = vunpack.c.l.b16 %v97
    %v118 = vpack.c.b16 %v115, %v114
    %v119 = vpack.c.b16 %v117, %v116
    %vm122 = vcmask 261120
    %v124 = vsel %vm122, %v109, 0
    %126 = vmatprep.subr.bf16.mxu0 0
    %127 = vmatpush1.bf16.msra.mxu0 %v118
    %128 = vmatprep.subr.bf16.mxu0 0
    %129 = vmatpush1.bf16.msra.mxu0 %v119
    %130 = vmatprep.subr.bf16.mxu0 0
    %131 = vmatpush1.bf16.msra.mxu0 0
    %132 = vmatprep.subr.bf16.mxu0 0
    %133 = vmatpush1.bf16.msra.mxu0 0
    %134 = vmatprep.subr.bf16.mxu0 0
    %135 = vmatpush1.bf16.msra.mxu0 0
    %136 = vmatprep.subr.bf16.mxu0 0
    %137 = vmatpush1.bf16.msra.mxu0 0
    %138 = vmatprep.subr.bf16.mxu0 0
    %139 = vmatpush1.bf16.msra.mxu0 0
    %140 = vmatprep.subr.bf16.mxu0 0
    %141 = vmatpush1.bf16.msra.mxu0 0
    %142 = vmatprep.subr.bf16.mxu0 0
    %143 = vmatpush1.bf16.msra.mxu0 0
    %144 = vmatprep.subr.bf16.mxu0 0
    %145 = vmatpush1.bf16.msra.mxu0 0
    %146 = vmatprep.subr.bf16.mxu0 0
    %147 = vmatpush1.bf16.msra.mxu0 0
    %148 = vmatprep.subr.bf16.mxu0 0
    %149 = vmatpush1.bf16.msra.mxu0 0
    %150 = vmatprep.subr.bf16.mxu0 0
    %151 = vmatpush1.bf16.msra.mxu0 0
    %152 = vmatprep.subr.bf16.mxu0 0
    %153 = vmatpush1.bf16.msra.mxu0 0
    %154 = vmatprep.subr.bf16.mxu0 0
    %155 = vmatpush1.bf16.msra.mxu0 0
    %156 = vmatprep.subr.bf16.mxu0 0
    %157 = vmatpush1.bf16.msra.mxu0 0
    %158 = vmatprep.mubr.bf16.mxu0 0
    %159 = vmatmul.mubr.bf16.gmra.mrb[0].mxu0 %v124
    %v160 = vpop.f32.mrb[0].mxu0
    %v161 = vadd.f32 %v103, %v160
    %v162 = vpop.f32.mrb[0].mxu0
    %v163 = vpop.f32.mrb[0].mxu0
    %v164 = vadd.f32 %v103, %v163
    %v165 = vpop.f32.mrb[0].mxu0
    %166 = vdwg.mxu0
    %v167 = vmax.f32 %v161, 0.0
    %v168 = vmax.f32 %v164, 0.0
    %v169 = vpack.c.bf16 %v168, %v167
    %v170 = vld [vmem:[#allocation7] sm:$0xf]
    %v171 = vld [vmem:[#allocation7 + $0x4] sm:$0xf]
    %v172 = vld [vmem:[#allocation7 + $0x8] sm:$0xf]
    %v173 = vld [vmem:[#allocation7 + $0xc] sm:$0xf]
    %v174 = vld [vmem:[#allocation7 + $0x10] sm:$0xf]
    %v175 = vld [vmem:[#allocation7 + $0x14] sm:$0xf]
    %v176 = vld [vmem:[#allocation7 + $0x18] sm:$0xf]
    %v177 = vld [vmem:[#allocation7 + $0x1c] sm:$0xf]
    %v178 = vld [vmem:[#allocation7 + $0x20] sm:$0xf]
    %v179 = vld [vmem:[#allocation7 + $0x24] sm:$0xf]
    %v180 = vld [vmem:[#allocation7 + $0x28] sm:$0xf]
    %v181 = vld [vmem:[#allocation7 + $0x2c] sm:$0xf]
    %v182 = vld [vmem:[#allocation7 + $0x30] sm:$0xf]
    %v183 = vld [vmem:[#allocation7 + $0x34] sm:$0xf]
    %v184 = vld [vmem:[#allocation7 + $0x38] sm:$0xf]
    %v185 = vld [vmem:[#allocation7 + $0x3c] sm:$0xf]
    %v186 = vld [vmem:[#allocation8] sm:$0x1]
    %v188 = vlaneseq
    %v189 = vshrl.u32 %v188, 7
    %v190 = vsub.s32 0, %v189
    %v191 = vrot.slane %v186, %v190
    %v209 = vunpack.c.l.b16 %v170
    %v210 = vunpack.c.l.b16 %v171
    %v211 = vunpack.c.l.b16 %v172
    %v212 = vunpack.c.l.b16 %v173
    %v213 = vunpack.c.l.b16 %v174
    %v214 = vunpack.c.l.b16 %v175
    %v215 = vunpack.c.l.b16 %v176
    %v216 = vunpack.c.l.b16 %v177
    %v217 = vunpack.c.l.b16 %v178
    %v218 = vunpack.c.l.b16 %v179
    %v219 = vunpack.c.l.b16 %v180
    %v220 = vunpack.c.l.b16 %v181
    %v221 = vunpack.c.l.b16 %v182
    %v222 = vunpack.c.l.b16 %v183
    %v223 = vunpack.c.l.b16 %v184
    %v224 = vunpack.c.l.b16 %v185
    %v225 = vpack.c.b16 %v210, %v209
    %v226 = vpack.c.b16 %v212, %v211
    %v227 = vpack.c.b16 %v214, %v213
    %v228 = vpack.c.b16 %v216, %v215
    %v229 = vpack.c.b16 %v218, %v217
    %v230 = vpack.c.b16 %v220, %v219
    %v231 = vpack.c.b16 %v222, %v221
    %v232 = vpack.c.b16 %v224, %v223
    %241 = vmatprep.subr.bf16.mxu0 0
    %242 = vmatpush1.bf16.msra.mxu0 %v225
    %243 = vmatprep.subr.bf16.mxu0 0
    %244 = vmatpush1.bf16.msra.mxu0 %v226
    %245 = vmatprep.subr.bf16.mxu0 0
    %246 = vmatpush1.bf16.msra.mxu0 %v227
    %247 = vmatprep.subr.bf16.mxu0 0
    %248 = vmatpush1.bf16.msra.mxu0 %v228
    %249 = vmatprep.subr.bf16.mxu0 0
    %250 = vmatpush1.bf16.msra.mxu0 %v229
    %251 = vmatprep.subr.bf16.mxu0 0
    %252 = vmatpush1.bf16.msra.mxu0 %v230
    %253 = vmatprep.subr.bf16.mxu0 0
    %254 = vmatpush1.bf16.msra.mxu0 %v231
    %255 = vmatprep.subr.bf16.mxu0 0
    %256 = vmatpush1.bf16.msra.mxu0 %v232
    %257 = vmatprep.subr.bf16.mxu0 0
    %258 = vmatpush1.bf16.msra.mxu0 0
    %259 = vmatprep.subr.bf16.mxu0 0
    %260 = vmatpush1.bf16.msra.mxu0 0
    %261 = vmatprep.subr.bf16.mxu0 0
    %262 = vmatpush1.bf16.msra.mxu0 0
    %263 = vmatprep.subr.bf16.mxu0 0
    %264 = vmatpush1.bf16.msra.mxu0 0
    %265 = vmatprep.subr.bf16.mxu0 0
    %266 = vmatpush1.bf16.msra.mxu0 0
    %267 = vmatprep.subr.bf16.mxu0 0
    %268 = vmatpush1.bf16.msra.mxu0 0
    %269 = vmatprep.subr.bf16.mxu0 0
    %270 = vmatpush1.bf16.msra.mxu0 0
    %271 = vmatprep.subr.bf16.mxu0 0
    %272 = vmatpush1.bf16.msra.mxu0 0
    %273 = vmatprep.mubr.bf16.mxu0 0
    %274 = vmatmul.mubr.bf16.gmra.mrb[0].mxu0 %v169
    %v275 = vpop.f32.mrb[0].mxu0
    %v276 = vadd.f32 %v191, %v275
    %v277 = vpop.f32.mrb[0].mxu0
    %v278 = vpop.f32.mrb[0].mxu0
    %v279 = vadd.f32 %v191, %v278
    %v280 = vpop.f32.mrb[0].mxu0
    %281 = vdwg.mxu0
    %v282 = vmax.f32 %v276, 0.0
    %v283 = vmax.f32 %v279, 0.0
    %v284 = vpack.c.bf16 %v283, %v282
    %v285 = vld [vmem:[%s5] sm:$0xf]
    %v286 = vld [vmem:[%s5 + $0x4] sm:$0xf]
    %v287 = vld [vmem:[%s5 + $0x8] sm:$0xf]
    %v288 = vld [vmem:[%s5 + $0xc] sm:$0xf]
    %v289 = vld [vmem:[%s5 + $0x10] sm:$0xf]
    %v290 = vld [vmem:[%s5 + $0x14] sm:$0xf]
    %v291 = vld [vmem:[%s5 + $0x18] sm:$0xf]
    %v292 = vld [vmem:[%s5 + $0x1c] sm:$0xf]
    %v293 = vld [vmem:[%s5 + $0x20] sm:$0xf]
    %v294 = vld [vmem:[%s5 + $0x24] sm:$0xf]
    %v295 = vld [vmem:[%s5 + $0x28] sm:$0xf]
    %v296 = vld [vmem:[%s5 + $0x2c] sm:$0xf]
    %v297 = vld [vmem:[%s5 + $0x30] sm:$0xf]
    %v298 = vld [vmem:[%s5 + $0x34] sm:$0xf]
    %v299 = vld [vmem:[%s5 + $0x38] sm:$0xf]
    %v300 = vld [vmem:[%s5 + $0x3c] sm:$0xf]
    %v301 = vld [vmem:[#allocation10] sm:$0x1]
    %v303 = vlaneseq
    %v304 = vshrl.u32 %v303, 7
    %v305 = vsub.s32 0, %v304
    %v306 = vrot.slane %v301, %v305
    %v324 = vunpack.c.l.b16 %v285
    %v325 = vunpack.c.l.b16 %v286
    %v326 = vunpack.c.l.b16 %v287
    %v327 = vunpack.c.l.b16 %v288
    %v328 = vunpack.c.l.b16 %v289
    %v329 = vunpack.c.l.b16 %v290
    %v330 = vunpack.c.l.b16 %v291
    %v331 = vunpack.c.l.b16 %v292
    %v332 = vunpack.c.l.b16 %v293
    %v333 = vunpack.c.l.b16 %v294
    %v334 = vunpack.c.l.b16 %v295
    %v335 = vunpack.c.l.b16 %v296
    %v336 = vunpack.c.l.b16 %v297
    %v337 = vunpack.c.l.b16 %v298
    %v338 = vunpack.c.l.b16 %v299
    %v339 = vunpack.c.l.b16 %v300
    %v340 = vpack.c.b16 %v325, %v324
    %v341 = vpack.c.b16 %v327, %v326
    %v342 = vpack.c.b16 %v329, %v328
    %v343 = vpack.c.b16 %v331, %v330
    %v344 = vpack.c.b16 %v333, %v332
    %v345 = vpack.c.b16 %v335, %v334
    %v346 = vpack.c.b16 %v337, %v336
    %v347 = vpack.c.b16 %v339, %v338
    %356 = vmatprep.subr.bf16.mxu0 0
    %357 = vmatpush1.bf16.msra.mxu0 %v340
    %358 = vmatprep.subr.bf16.mxu0 0
    %359 = vmatpush1.bf16.msra.mxu0 %v341
    %360 = vmatprep.subr.bf16.mxu0 0
    %361 = vmatpush1.bf16.msra.mxu0 %v342
    %362 = vmatprep.subr.bf16.mxu0 0
    %363 = vmatpush1.bf16.msra.mxu0 %v343
    %364 = vmatprep.subr.bf16.mxu0 0
    %365 = vmatpush1.bf16.msra.mxu0 %v344
    %366 = vmatprep.subr.bf16.mxu0 0
    %367 = vmatpush1.bf16.msra.mxu0 %v345
    %368 = vmatprep.subr.bf16.mxu0 0
    %369 = vmatpush1.bf16.msra.mxu0 %v346
    %370 = vmatprep.subr.bf16.mxu0 0
    %371 = vmatpush1.bf16.msra.mxu0 %v347
    %372 = vmatprep.subr.bf16.mxu0 0
    %373 = vmatpush1.bf16.msra.mxu0 0
    %374 = vmatprep.subr.bf16.mxu0 0
    %375 = vmatpush1.bf16.msra.mxu0 0
    %376 = vmatprep.subr.bf16.mxu0 0
    %377 = vmatpush1.bf16.msra.mxu0 0
    %378 = vmatprep.subr.bf16.mxu0 0
    %379 = vmatpush1.bf16.msra.mxu0 0
    %380 = vmatprep.subr.bf16.mxu0 0
    %381 = vmatpush1.bf16.msra.mxu0 0
    %382 = vmatprep.subr.bf16.mxu0 0
    %383 = vmatpush1.bf16.msra.mxu0 0
    %384 = vmatprep.subr.bf16.mxu0 0
    %385 = vmatpush1.bf16.msra.mxu0 0
    %386 = vmatprep.subr.bf16.mxu0 0
    %387 = vmatpush1.bf16.msra.mxu0 0
    %388 = vmatprep.mubr.bf16.mxu0 0
    %389 = vmatmul.mubr.bf16.gmra.mrb[0].mxu0 %v284
    %v390 = vpop.f32.mrb[0].mxu0
    %v391 = vadd.f32 %v306, %v390
    %v392 = vpop.f32.mrb[0].mxu0
    %v393 = vpop.f32.mrb[0].mxu0
    %v394 = vadd.f32 %v306, %v393
    %v395 = vpop.f32.mrb[0].mxu0
    %396 = vdwg.mxu0
    %397 = vst [vmem:[#allocation2] sm:$0xff] 0.0
    %398 = vst [vmem:[#allocation2 + $0x8] sm:$0xff] 0.0
    %v399 = vld [vmem:[%s7] sm:$0xff]
    %v400 = vld [vmem:[%s7 + $0x8] sm:$0xff]
    %vm401 = vcmask 72704
    %402 = vst.msk [vmem:[#allocation2] sm:$0xff] %vm401, %v399
    %403 = vst.msk [vmem:[#allocation2 + $0x8] sm:$0xff] %vm401, %v400
    %v404 = vld [vmem:[#allocation2] sm:$0xff]
    %v405 = vld [vmem:[#allocation2 + $0x8] sm:$0xff]
    %v406 = vlaneseq
    %v407 = vand.u32 %v406, 127
    %v408 = vadd.f32 %v391, %v404
    %v409 = vadd.f32 %v394, %v405
    %v410 = vmul.f32 %v408, 5.0
    %v411 = vmul.f32 %v409, 5.0
    %v412 = vtanh.pop %v391
    %v413 = vtanh.pop %v394
    %vm414 = vcmp.ge.s32.totalorder %v407, 0
    %vm415 = vcmp.lt.s32.totalorder %v407, 3
    %vm416 = vmand %vm414, %vm415
    %v417 = vsel %vm416, 1, 0
    %vm418 = vcmp.eq.s32.totalorder %v417, 1
    %v419 = vsel %vm418, %v410, -1e+30
    %v420 = vsel %vm418, %v411, -1e+30
    %421 = vmax.xlane.f32.xlu0 %v419
    %v422 = vpop.xlane.xlu0 %421
    %423 = vmax.xlane.f32.xlu0 %v420
    %v424 = vpop.xlane.xlu0 %423
    %v425 = vsub.f32 %v419, %v422
    %v426 = vsub.f32 %v420, %v424
    %v427 = vmul.f32 %v425, 1.442695
    %v428 = vpow.pop %v427
    %v429 = vmul.f32 %v426, 1.442695
    %v430 = vpow.pop %v429
    %431 = vadd.xlane.f32.xlu0 %v428
    %v432 = vpop.xlane.xlu0 %431
    %433 = vadd.xlane.f32.xlu0 %v430
    %v434 = vpop.xlane.xlu0 %433
    %v435 = vrcp.pop %v432
    %v436 = vrcp.pop %v434
    %v437 = vmul.f32 %v428, %v435
    %v438 = vmul.f32 %v430, %v436
    %v439 = vsel %vm418, %v437, %v412
    %v440 = vsel %vm418, %v438, %v413
    %vm441 = vcmp.ge.s32.totalorder %v407, 4
    %vm442 = vcmp.lt.s32.totalorder %v407, 8
    %vm443 = vmand %vm441, %vm442
    %v444 = vsel %vm443, 1, 0
    %vm445 = vcmp.eq.s32.totalorder %v444, 1
    %v446 = vsel %vm445, %v410, -1e+30
    %v447 = vsel %vm445, %v411, -1e+30
    %448 = vmax.xlane.f32.xlu0 %v446
    %v449 = vpop.xlane.xlu0 %448
    %450 = vmax.xlane.f32.xlu0 %v447
    %v451 = vpop.xlane.xlu0 %450
    %v452 = vsub.f32 %v446, %v449
    %v453 = vsub.f32 %v447, %v451
    %v454 = vmul.f32 %v452, 1.442695
    %v455 = vpow.pop %v454
    %v456 = vmul.f32 %v453, 1.442695
    %v457 = vpow.pop %v456
    %458 = vadd.xlane.f32.xlu0 %v455
    %v459 = vpop.xlane.xlu0 %458
    %460 = vadd.xlane.f32.xlu0 %v457
    %v461 = vpop.xlane.xlu0 %460
    %v462 = vrcp.pop %v459
    %v463 = vrcp.pop %v461
    %v464 = vmul.f32 %v455, %v462
    %v465 = vmul.f32 %v457, %v463
    %v466 = vsel %vm445, %v464, %v439
    %v467 = vsel %vm445, %v465, %v440
    %468 = vst [vmem:[%s8] sm:$0xff] %v466
    %469 = vst [vmem:[%s8 + $0x8] sm:$0xff] %v467
    // Predicated region
    $region54: #{decoder_forward.1} parent=1 // pred_check
      _
    $region55: #{decoder_forward.1} parent=1 // pred_check_branch
      %471 = sbr.rel (0) target = $region57
    $region56: #{decoder_forward.1} parent=1 // pred_region
      _
    $region57: #{decoder_forward.1} parent=1 // pred_fallthru
      _
    // Predicated region
    $region58: #{decoder_forward.1} parent=1 // pred_check
      _
    $region59: #{decoder_forward.1} parent=1 // pred_check_branch
      %473 = sbr.rel (0) target = $region61
    $region60: #{decoder_forward.1} parent=1 // pred_region
      _
    $region61: #{decoder_forward.1} parent=1 // pred_fallthru
      _
    %474 = vsyncpa [#allocation4], 1
    %475 = vsyncpa [#allocation6], 1
    %476 = vsyncpa [#allocation9], 1

</llo_original>
